<compile_context>
chip_gen: v7x
topology: tpu7x:2x2x1
jax: 0.10.0
libtpu: 0.0.40
codegen_flags: <defaults>
</compile_context>

<pallas_src>
import jax
import jax.numpy as jnp
from jax import lax
from jax.experimental import pallas as pl
from jax.experimental.pallas import tpu as pltpu

EPS = 1e-5
HIDDEN = 8
MAX_CHUNK = 8192                      # input rows streamed per grid step


def _round_up(n, m):
    return ((n + m - 1) // m) * m


def _pick_vmem_limit():
    """Generation-aware VMEM budget (raise toward 112 MiB on v5e/v6e, ~48 MiB on v7x)."""
    try:
        cap = pltpu.get_tpu_info().vmem_capacity_bytes
    except Exception:                 # conservative cross-generation fallback
        return 48 * 1024 * 1024
    return int(max(32 * 1024 * 1024, min(cap - 16 * 1024 * 1024, 112 * 1024 * 1024)))


def _make_kernel(batch, chunk, num_chunks):
    b_res = num_chunks * chunk        # resident (padded) batch width of the slab
    n_pad = b_res - batch             # padding columns (all in the last chunk)
    need_mask = n_pad > 0
    inv_b = 1.0 / float(batch)
    num_full = batch // chunk         # full output chunks
    tail = batch - num_full * chunk   # rows of the partial last output chunk

    def bn_affine(s1, s2, gamma, beta):
        mean = s1 * inv_b
        var = jnp.maximum(s2 * inv_b - mean * mean, 0.0)     # biased variance, clamped
        scale = gamma * lax.rsqrt(var + EPS)                 # EUP rsqrt
        shift = beta - mean * scale
        return scale, shift

    def kernel(x_ref, w1_ref, wt_ref, vec_ref, w5_ref, b5_ref, out_ref,
               z_ref, s1_ref, s2_ref):
        i = pl.program_id(0)

        # ---------------- phase 1 (every step): stream layer 1 over input chunks ------
        @pl.when(i == 0)
        def _():
            s1_ref[...] = jnp.zeros_like(s1_ref)
            s2_ref[...] = jnp.zeros_like(s2_ref)

        v0 = vec_ref[0]                                      # (8, 3): bias, gamma, beta
        # Linear 1 on the MXU in batch-major form, then to feature-major (batch -> lanes).
        z_bm = jnp.dot(x_ref[...], w1_ref[...],
                       preferred_element_type=jnp.float32)   # (chunk, 8)
        z = jnp.maximum(z_bm.T + v0[:, 0:1], 0.0)            # (8, chunk)
        if need_mask:
            # Zero out-of-bounds columns of the last chunk (stale-VMEM garbage rows).
            valid = jnp.minimum(chunk, batch - i * chunk)
            lane = lax.broadcasted_iota(jnp.int32, (HIDDEN, chunk), 1)
            z = jnp.where(lane < valid, z, 0.0)
        s1_ref[...] += jnp.sum(z, axis=1, keepdims=True)     # XLU lane reductions
        s2_ref[...] += jnp.sum(z * z, axis=1, keepdims=True)
        z_ref[i, :, :] = z

        # ------------- phase 2 (last step): BN1, layers 2-4, head, output write --------
        @pl.when(i == num_chunks - 1)
        def _():
            scale, shift = bn_affine(s1_ref[...], s2_ref[...], v0[:, 1:2], v0[:, 2:3])
            z_pad = jnp.zeros((HIDDEN, 1), jnp.float32)      # pad columns of z1 are 0

            for l in range(3):                               # hidden layers 2..4
                w = wt_ref[l]                                # (8, 8) = W^T
                v = vec_ref[l + 1]                           # (8, 3)
                b, g, be = v[:, 0:1], v[:, 1:2], v[:, 2:3]

                # Per-feature pad column, carried analytically (no full-width masking).
                h_pad = z_pad * scale + shift
                z_pad = jnp.maximum(
                    jnp.dot(w, h_pad, preferred_element_type=jnp.float32) + b, 0.0)

                s1_ref[...] = jnp.zeros_like(s1_ref)
                s2_ref[...] = jnp.zeros_like(s2_ref)

                @pl.loop(0, num_chunks)
                def _(c):
                    h_c = z_ref[c] * scale + shift           # folded BN affine: one FMA
                    z_c = jnp.maximum(
                        jnp.dot(w, h_c, preferred_element_type=jnp.float32) + b, 0.0)
                    z_ref[c, :, :] = z_c
                    s1_ref[...] += jnp.sum(z_c, axis=1, keepdims=True)
                    s2_ref[...] += jnp.sum(z_c * z_c, axis=1, keepdims=True)

                s1 = s1_ref[...]
                s2 = s2_ref[...]
                if need_mask:                                # remove pad-column contribution
                    s1 = s1 - float(n_pad) * z_pad
                    s2 = s2 - float(n_pad) * (z_pad * z_pad)
                scale, shift = bn_affine(s1, s2, g, be)

            # Head: out = (z4*scale + shift)^T @ W5 + b5, written chunk-wise, batch-major.
            w5 = w5_ref[...]                                 # (8, out_dim)
            b5 = b5_ref[...]                                 # (1, out_dim)

            if num_full > 0:
                @pl.loop(0, num_full)
                def _(c):
                    h_c = z_ref[c] * scale + shift
                    o_c = jnp.dot(h_c.T, w5, preferred_element_type=jnp.float32) + b5
                    row = pl.multiple_of(c * chunk, chunk)
                    out_ref[pl.ds(row, chunk), :] = o_c

            if tail > 0:                                     # static partial last chunk
                h_c = z_ref[num_full] * scale + shift
                o_c = jnp.dot(h_c.T, w5, preferred_element_type=jnp.float32) + b5
                out_ref[pl.ds(num_full * chunk, tail), :] = o_c[:tail, :]

    return kernel


def _pack_params(params, in_dim, out_dim):
    """Pack the 18 PyTorch-ordered tensors into 5 small slabs (fewer DMA descriptors)."""
    w1 = jnp.asarray(params[0], jnp.float32).reshape(in_dim, HIDDEN)
    wt = jnp.stack([jnp.asarray(params[4 * l], jnp.float32).T for l in range(1, 4)])
    vec = jnp.stack([
        jnp.stack([jnp.ravel(jnp.asarray(params[4 * l + k], jnp.float32))
                   for k in range(1, 4)], axis=1)            # (8, 3): bias, gamma, beta
        for l in range(4)])                                  # (4, 8, 3)
    w5 = jnp.asarray(params[16], jnp.float32).reshape(HIDDEN, out_dim)
    b5 = jnp.asarray(params[17], jnp.float32).reshape(1, out_dim)
    return w1, wt, vec, w5, b5


def trojannet_forward(x, params, *, max_chunk=MAX_CHUNK):
    """x: (B, ...) with prod(...) == input_dim.  params: flat list of 18 arrays."""
    batch = x.shape[0]
    x_flat = x.reshape(batch, -1).astype(jnp.float32)        # nn.Flatten (layout no-op)
    in_dim = x_flat.shape[1]
    out_dim = params[-1].shape[-1]

    chunk = _round_up(min(max_chunk, _round_up(batch, 8)), 8)
    num_chunks = -(-batch // chunk)

    w1, wt, vec, w5, b5 = _pack_params(params, in_dim, out_dim)

    return pl.pallas_call(
        _make_kernel(batch, chunk, num_chunks),
        out_shape=jax.ShapeDtypeStruct((batch, out_dim), jnp.float32),
        grid=(num_chunks,),
        in_specs=[
            pl.BlockSpec((chunk, in_dim), lambda i: (i, 0)),        # streamed input
            pl.BlockSpec((in_dim, HIDDEN), lambda i: (0, 0)),       # W1 (resident)
            pl.BlockSpec((3, HIDDEN, HIDDEN), lambda i: (0, 0, 0)),  # W2..W4 transposed
            pl.BlockSpec((4, HIDDEN, 3), lambda i: (0, 0, 0)),      # bias/gamma/beta
            pl.BlockSpec((HIDDEN, out_dim), lambda i: (0, 0)),      # W5
            pl.BlockSpec((1, out_dim), lambda i: (0, 0)),           # b5
        ],
        out_specs=pl.BlockSpec((batch, out_dim), lambda i: (0, 0)),  # resident, one writeback
        scratch_shapes=[
            pltpu.VMEM((num_chunks, HIDDEN, chunk), jnp.float32),   # resident activations
            pltpu.VMEM((HIDDEN, 1), jnp.float32),                   # sum(z)
            pltpu.VMEM((HIDDEN, 1), jnp.float32),                   # sum(z^2)
        ],
        compiler_params=pltpu.CompilerParams(
            dimension_semantics=("arbitrary",),
            vmem_limit_bytes=_pick_vmem_limit()),
    )(x_flat, w1, wt, vec, w5, b5)


def init_params(key, input_dim=16, hidden=8, output_dim=10):
    """Deterministic parameter init (shapes match the PyTorch module, W stored (in, out))."""
    params = []
    dims = [(input_dim, hidden), (hidden, hidden), (hidden, hidden), (hidden, hidden)]
    for (din, dout) in dims:
        key, kw, kb = jax.random.split(key, 3)
        scale = 1.0 / jnp.sqrt(din)
        w = jax.random.uniform(kw, (din, dout), jnp.float32, -scale, scale)
        bias = jax.random.uniform(kb, (1, dout), jnp.float32, -scale, scale)
        gamma = jnp.ones((1, dout), jnp.float32)             # BN weight init
        beta = jnp.zeros((1, dout), jnp.float32)              # BN bias init
        params += [w, bias, gamma, beta]
    key, kw, kb = jax.random.split(key, 3)
    scale = 1.0 / jnp.sqrt(hidden)
    w5 = jax.random.uniform(kw, (hidden, output_dim), jnp.float32, -scale, scale)
    b5 = jax.random.uniform(kb, (1, output_dim), jnp.float32, -scale, scale)
    params += [w5, b5]
    return params


def reference_forward(x, params):
    """Pure-JAX reference (batch-major, training-mode BN), for a sanity check."""
    h = x.reshape(x.shape[0], -1).astype(jnp.float32)
    hp = jax.lax.Precision.HIGHEST
    for blk in range(4):
        w, bias, gamma, beta = params[blk * 4: blk * 4 + 4]
        h = jnp.maximum(jnp.dot(h, w, precision=hp) + bias, 0.0)
        mean = jnp.mean(h, axis=0, keepdims=True)
        var = jnp.mean((h - mean) ** 2, axis=0, keepdims=True)   # biased variance
        h = (h - mean) / jnp.sqrt(var + EPS) * gamma + beta
    return jnp.dot(h, params[16], precision=hp) + params[17]


if __name__ == "__main__":
    key = jax.random.PRNGKey(0)
    key, k1, k2, k3, k4 = jax.random.split(key, 5)

    output_dim = 10
    params = init_params(key, input_dim=16, hidden=HIDDEN, output_dim=output_dim)

    cases = [
        # (name, input, extra kwargs)
        ("batch=8  single chunk, no padding", jax.random.normal(k1, (8, 4, 4), jnp.float32), {}),
        ("batch=128 lane-dense single chunk", jax.random.normal(k2, (128, 4, 4), jnp.float32), {}),
        ("batch=100 padded tail inside chunk", jax.random.normal(k3, (100, 4, 4), jnp.float32), {}),
        ("batch=200 multi-chunk stream", jax.random.normal(k4, (200, 4, 4), jnp.float32),
         {"max_chunk": 64}),
    ]
    for name, x, kw in cases:
        out = jax.block_until_ready(trojannet_forward(x, params, **kw))
        ref = reference_forward(x, params)
        assert out.shape == (x.shape[0], output_dim), f"bad shape: {name}"
        assert jnp.allclose(out, ref, atol=2e-4, rtol=2e-4), f"mismatch: {name}"

    print("KERNEL_OK")
</pallas_src>

<mosaic_0001>
module attributes {stable_mosaic.version = 11 : i64} {
  func.func @kernel(%arg0: i32, %arg1: memref<8x16xf32, #tpu.memory_space<vmem>>, %arg2: memref<16x8xf32, #tpu.memory_space<vmem>>, %arg3: memref<3x8x8xf32, #tpu.memory_space<vmem>>, %arg4: memref<4x8x3xf32, #tpu.memory_space<vmem>>, %arg5: memref<8x10xf32, #tpu.memory_space<vmem>>, %arg6: memref<1x10xf32, #tpu.memory_space<vmem>>, %arg7: memref<8x10xf32, #tpu.memory_space<vmem>>, %arg8: memref<1x8x8xf32, #tpu.memory_space<vmem>>, %arg9: memref<8x1xf32, #tpu.memory_space<vmem>>, %arg10: memref<8x1xf32, #tpu.memory_space<vmem>>) attributes {dimension_semantics = [#tpu.dimension_semantics<arbitrary>], iteration_bounds = array<i64: 1>, scalar_prefetch = 0 : i64, scratch_operands = 3 : i64, tpu.core_type = #tpu.core_type<tc>, window_params = [{transform_indices = @transform_0, window_bounds = array<i64: 8, 16>}, {pipeline_mode = #tpu.pipeline_mode<synchronous>, transform_indices = @transform_1, window_bounds = array<i64: 16, 8>}, {pipeline_mode = #tpu.pipeline_mode<synchronous>, transform_indices = @transform_2, window_bounds = array<i64: 3, 8, 8>}, {pipeline_mode = #tpu.pipeline_mode<synchronous>, transform_indices = @transform_3, window_bounds = array<i64: 4, 8, 3>}, {pipeline_mode = #tpu.pipeline_mode<synchronous>, transform_indices = @transform_4, window_bounds = array<i64: 8, 10>}, {pipeline_mode = #tpu.pipeline_mode<synchronous>, transform_indices = @transform_5, window_bounds = array<i64: 1, 10>}, {pipeline_mode = #tpu.pipeline_mode<synchronous>, transform_indices = @transform_6, window_bounds = array<i64: 8, 10>}]} {
    %c0_i32 = arith.constant 0 : i32
    %0 = arith.cmpi eq, %arg0, %c0_i32 : i32
    %1 = arith.extui %0 : i1 to i32
    %c0_i32_0 = arith.constant 0 : i32
    %2 = arith.cmpi ne, %1, %c0_i32_0 : i32
    scf.if %2 {
      %cst_22 = arith.constant 0.000000e+00 : f32
      %32 = vector.broadcast %cst_22 : f32 to vector<8x1xf32>
      %c0_23 = arith.constant 0 : index
      %c0_24 = arith.constant 0 : index
      %33 = vector.load %arg9[%c0_23, %c0_24] : memref<8x1xf32, #tpu.memory_space<vmem>>, vector<8x1xf32>
      tpu.vector_store %arg9[%c0_23, %c0_24], %32 {strides = array<i32>} : memref<8x1xf32, #tpu.memory_space<vmem>>, vector<8x1xf32>,
      %cst_25 = arith.constant 0.000000e+00 : f32
      %34 = vector.broadcast %cst_25 : f32 to vector<8x1xf32>
      %c0_26 = arith.constant 0 : index
      %c0_27 = arith.constant 0 : index
      %35 = vector.load %arg10[%c0_26, %c0_27] : memref<8x1xf32, #tpu.memory_space<vmem>>, vector<8x1xf32>
      tpu.vector_store %arg10[%c0_26, %c0_27], %34 {strides = array<i32>} : memref<8x1xf32, #tpu.memory_space<vmem>>, vector<8x1xf32>,
    } else {
    }
    %c0 = arith.constant 0 : index
    %c0_1 = arith.constant 0 : index
    %c0_2 = arith.constant 0 : index
    %3 = vector.load %arg4[%c0, %c0_1, %c0_2] : memref<4x8x3xf32, #tpu.memory_space<vmem>>, vector<1x8x3xf32>
    %4 = vector.shape_cast %3 : vector<1x8x3xf32> to vector<8x3xf32>
    %c0_3 = arith.constant 0 : index
    %c0_4 = arith.constant 0 : index
    %5 = vector.load %arg1[%c0_3, %c0_4] : memref<8x16xf32, #tpu.memory_space<vmem>>, vector<8x16xf32>
    %c0_5 = arith.constant 0 : index
    %c0_6 = arith.constant 0 : index
    %6 = vector.load %arg2[%c0_5, %c0_6] : memref<16x8xf32, #tpu.memory_space<vmem>>, vector<16x8xf32>
    %cst = arith.constant dense<0.000000e+00> : vector<8x8xf32>
    %7 = tpu.matmul %5, %6, %cst {dimension_numbers = #tpu.dot_dimension_numbers<[1], [0], [0], [1], [0, 0, 1, 1], [], []>} : vector<8x16xf32>, vector<16x8xf32>, vector<8x8xf32> -> vector<8x8xf32>
    %8 = tpu.transpose %7, [1, 0] : vector<8x8xf32> -> vector<8x8xf32>
    %9 = vector.extract_strided_slice %4 {offsets = [0, 0], sizes = [8, 1], strides = [1, 1]} : vector<8x3xf32> to vector<8x1xf32>
    %10 = vector.broadcast %9 : vector<8x1xf32> to vector<8x8xf32>
    %11 = arith.addf %8, %10 : vector<8x8xf32>
    %cst_7 = arith.constant 0.000000e+00 : f32
    %12 = vector.broadcast %cst_7 : f32 to vector<8x8xf32>
    %13 = arith.maximumf %11, %12 : vector<8x8xf32>
    %c0_8 = arith.constant 0 : index
    %c0_9 = arith.constant 0 : index
    %14 = vector.load %arg9[%c0_8, %c0_9] : memref<8x1xf32, #tpu.memory_space<vmem>>, vector<8x1xf32>
    %cst_10 = arith.constant dense<0.000000e+00> : vector<8xf32>
    %15 = vector.multi_reduction <add>, %13, %cst_10 [1] : vector<8x8xf32> to vector<8xf32>
    %16 = vector.shape_cast %15 : vector<8xf32> to vector<8x1xf32>
    %17 = arith.addf %14, %16 : vector<8x1xf32>
    %c0_11 = arith.constant 0 : index
    %c0_12 = arith.constant 0 : index
    %18 = vector.load %arg9[%c0_11, %c0_12] : memref<8x1xf32, #tpu.memory_space<vmem>>, vector<8x1xf32>
    tpu.vector_store %arg9[%c0_11, %c0_12], %17 {strides = array<i32>} : memref<8x1xf32, #tpu.memory_space<vmem>>, vector<8x1xf32>,
    %c0_13 = arith.constant 0 : index
    %c0_14 = arith.constant 0 : index
    %19 = vector.load %arg10[%c0_13, %c0_14] : memref<8x1xf32, #tpu.memory_space<vmem>>, vector<8x1xf32>
    %20 = arith.mulf %13, %13 : vector<8x8xf32>
    %cst_15 = arith.constant dense<0.000000e+00> : vector<8xf32>
    %21 = vector.multi_reduction <add>, %20, %cst_15 [1] : vector<8x8xf32> to vector<8xf32>
    %22 = vector.shape_cast %21 : vector<8xf32> to vector<8x1xf32>
    %23 = arith.addf %19, %22 : vector<8x1xf32>
    %c0_16 = arith.constant 0 : index
    %c0_17 = arith.constant 0 : index
    %24 = vector.load %arg10[%c0_16, %c0_17] : memref<8x1xf32, #tpu.memory_space<vmem>>, vector<8x1xf32>
    tpu.vector_store %arg10[%c0_16, %c0_17], %23 {strides = array<i32>} : memref<8x1xf32, #tpu.memory_space<vmem>>, vector<8x1xf32>,
    %25 = arith.index_cast %arg0 : i32 to index
    %c0_18 = arith.constant 0 : index
    %c0_19 = arith.constant 0 : index
    %26 = vector.load %arg8[%25, %c0_18, %c0_19] : memref<1x8x8xf32, #tpu.memory_space<vmem>>, vector<1x8x8xf32>
    %27 = vector.shape_cast %26 : vector<1x8x8xf32> to vector<8x8xf32>
    %28 = vector.shape_cast %13 : vector<8x8xf32> to vector<1x8x8xf32>
    tpu.vector_store %arg8[%25, %c0_18, %c0_19], %28 {strides = array<i32>} : memref<1x8x8xf32, #tpu.memory_space<vmem>>, vector<1x8x8xf32>,
    %c0_i32_20 = arith.constant 0 : i32
    %29 = arith.cmpi eq, %arg0, %c0_i32_20 : i32
    %30 = arith.extui %29 : i1 to i32
    %c0_i32_21 = arith.constant 0 : i32
    %31 = arith.cmpi ne, %30, %c0_i32_21 : i32
    scf.if %31 {
      %c0_22 = arith.constant 0 : index
      %c0_23 = arith.constant 0 : index
      %32 = vector.load %arg9[%c0_22, %c0_23] : memref<8x1xf32, #tpu.memory_space<vmem>>, vector<8x1xf32>
      %c0_24 = arith.constant 0 : index
      %c0_25 = arith.constant 0 : index
      %33 = vector.load %arg10[%c0_24, %c0_25] : memref<8x1xf32, #tpu.memory_space<vmem>>, vector<8x1xf32>
      %34 = vector.extract_strided_slice %4 {offsets = [0, 1], sizes = [8, 1], strides = [1, 1]} : vector<8x3xf32> to vector<8x1xf32>
      %35 = vector.extract_strided_slice %4 {offsets = [0, 2], sizes = [8, 1], strides = [1, 1]} : vector<8x3xf32> to vector<8x1xf32>
      %cst_26 = arith.constant 1.250000e-01 : f32
      %36 = vector.broadcast %cst_26 : f32 to vector<8x1xf32>
      %37 = arith.mulf %32, %36 : vector<8x1xf32>
      %cst_27 = arith.constant 1.250000e-01 : f32
      %38 = vector.broadcast %cst_27 : f32 to vector<8x1xf32>
      %39 = arith.mulf %33, %38 : vector<8x1xf32>
      %40 = arith.mulf %37, %37 : vector<8x1xf32>
      %41 = arith.subf %39, %40 : vector<8x1xf32>
      %cst_28 = arith.constant 0.000000e+00 : f32
      %42 = vector.broadcast %cst_28 : f32 to vector<8x1xf32>
      %43 = arith.maximumf %41, %42 : vector<8x1xf32>
      %cst_29 = arith.constant 9.99999974E-6 : f32
      %44 = vector.broadcast %cst_29 : f32 to vector<8x1xf32>
      %45 = arith.addf %43, %44 : vector<8x1xf32>
      %46 = math.rsqrt %45 : vector<8x1xf32>
      %47 = arith.mulf %34, %46 : vector<8x1xf32>
      %48 = arith.mulf %37, %47 : vector<8x1xf32>
      %49 = arith.subf %35, %48 : vector<8x1xf32>
      %c0_30 = arith.constant 0 : index
      %c0_31 = arith.constant 0 : index
      %c0_32 = arith.constant 0 : index
      %50 = vector.load %arg3[%c0_30, %c0_31, %c0_32] : memref<3x8x8xf32, #tpu.memory_space<vmem>>, vector<1x8x8xf32>
      %51 = vector.shape_cast %50 : vector<1x8x8xf32> to vector<8x8xf32>
      %c1 = arith.constant 1 : index
      %c0_33 = arith.constant 0 : index
      %c0_34 = arith.constant 0 : index
      %52 = vector.load %arg4[%c1, %c0_33, %c0_34] : memref<4x8x3xf32, #tpu.memory_space<vmem>>, vector<1x8x3xf32>
      %53 = vector.shape_cast %52 : vector<1x8x3xf32> to vector<8x3xf32>
      %54 = vector.extract_strided_slice %53 {offsets = [0, 0], sizes = [8, 1], strides = [1, 1]} : vector<8x3xf32> to vector<8x1xf32>
      %55 = vector.extract_strided_slice %53 {offsets = [0, 1], sizes = [8, 1], strides = [1, 1]} : vector<8x3xf32> to vector<8x1xf32>
      %56 = vector.extract_strided_slice %53 {offsets = [0, 2], sizes = [8, 1], strides = [1, 1]} : vector<8x3xf32> to vector<8x1xf32>
      %cst_35 = arith.constant 0.000000e+00 : f32
      %57 = vector.broadcast %cst_35 : f32 to vector<8x1xf32>
      %c0_36 = arith.constant 0 : index
      %c0_37 = arith.constant 0 : index
      %58 = vector.load %arg9[%c0_36, %c0_37] : memref<8x1xf32, #tpu.memory_space<vmem>>, vector<8x1xf32>
      tpu.vector_store %arg9[%c0_36, %c0_37], %57 {strides = array<i32>} : memref<8x1xf32, #tpu.memory_space<vmem>>, vector<8x1xf32>,
      %cst_38 = arith.constant 0.000000e+00 : f32
      %59 = vector.broadcast %cst_38 : f32 to vector<8x1xf32>
      %c0_39 = arith.constant 0 : index
      %c0_40 = arith.constant 0 : index
      %60 = vector.load %arg10[%c0_39, %c0_40] : memref<8x1xf32, #tpu.memory_space<vmem>>, vector<8x1xf32>
      tpu.vector_store %arg10[%c0_39, %c0_40], %59 {strides = array<i32>} : memref<8x1xf32, #tpu.memory_space<vmem>>, vector<8x1xf32>,
      %c0_i32_41 = arith.constant 0 : i32
      %c1_i32 = arith.constant 1 : i32
      %61 = arith.muli %c0_i32_41, %c1_i32 : i32
      %c0_i32_42 = arith.constant 0 : i32
      %62 = arith.addi %c0_i32_42, %61 : i32
      %63 = arith.index_cast %62 : i32 to index
      %c0_43 = arith.constant 0 : index
      %c0_44 = arith.constant 0 : index
      %64 = vector.load %arg8[%63, %c0_43, %c0_44] : memref<1x8x8xf32, #tpu.memory_space<vmem>>, vector<1x8x8xf32>
      %65 = vector.shape_cast %64 : vector<1x8x8xf32> to vector<8x8xf32>
      %66 = vector.broadcast %47 : vector<8x1xf32> to vector<8x8xf32>
      %67 = arith.mulf %65, %66 : vector<8x8xf32>
      %68 = vector.broadcast %49 : vector<8x1xf32> to vector<8x8xf32>
      %69 = arith.addf %67, %68 : vector<8x8xf32>
      %cst_45 = arith.constant dense<0.000000e+00> : vector<8x8xf32>
      %70 = tpu.matmul %51, %69, %cst_45 {dimension_numbers = #tpu.dot_dimension_numbers<[1], [0], [0], [1], [0, 0, 1, 1], [], []>} : vector<8x8xf32>, vector<8x8xf32>, vector<8x8xf32> -> vector<8x8xf32>
      %71 = vector.broadcast %54 : vector<8x1xf32> to vector<8x8xf32>
      %72 = arith.addf %70, %71 : vector<8x8xf32>
      %cst_46 = arith.constant 0.000000e+00 : f32
      %73 = vector.broadcast %cst_46 : f32 to vector<8x8xf32>
      %74 = arith.maximumf %72, %73 : vector<8x8xf32>
      %75 = arith.index_cast %62 : i32 to index
      %c0_47 = arith.constant 0 : index
      %c0_48 = arith.constant 0 : index
      %76 = vector.load %arg8[%75, %c0_47, %c0_48] : memref<1x8x8xf32, #tpu.memory_space<vmem>>, vector<1x8x8xf32>
      %77 = vector.shape_cast %76 : vector<1x8x8xf32> to vector<8x8xf32>
      %78 = vector.shape_cast %74 : vector<8x8xf32> to vector<1x8x8xf32>
      tpu.vector_store %arg8[%75, %c0_47, %c0_48], %78 {strides = array<i32>} : memref<1x8x8xf32, #tpu.memory_space<vmem>>, vector<1x8x8xf32>,
      %c0_49 = arith.constant 0 : index
      %c0_50 = arith.constant 0 : index
      %79 = vector.load %arg9[%c0_49, %c0_50] : memref<8x1xf32, #tpu.memory_space<vmem>>, vector<8x1xf32>
      %cst_51 = arith.constant dense<0.000000e+00> : vector<8xf32>
      %80 = vector.multi_reduction <add>, %74, %cst_51 [1] : vector<8x8xf32> to vector<8xf32>
      %81 = vector.shape_cast %80 : vector<8xf32> to vector<8x1xf32>
      %82 = arith.addf %79, %81 : vector<8x1xf32>
      %c0_52 = arith.constant 0 : index
      %c0_53 = arith.constant 0 : index
      %83 = vector.load %arg9[%c0_52, %c0_53] : memref<8x1xf32, #tpu.memory_space<vmem>>, vector<8x1xf32>
      tpu.vector_store %arg9[%c0_52, %c0_53], %82 {strides = array<i32>} : memref<8x1xf32, #tpu.memory_space<vmem>>, vector<8x1xf32>,
      %c0_54 = arith.constant 0 : index
      %c0_55 = arith.constant 0 : index
      %84 = vector.load %arg10[%c0_54, %c0_55] : memref<8x1xf32, #tpu.memory_space<vmem>>, vector<8x1xf32>
      %85 = arith.mulf %74, %74 : vector<8x8xf32>
      %cst_56 = arith.constant dense<0.000000e+00> : vector<8xf32>
      %86 = vector.multi_reduction <add>, %85, %cst_56 [1] : vector<8x8xf32> to vector<8xf32>
      %87 = vector.shape_cast %86 : vector<8xf32> to vector<8x1xf32>
      %88 = arith.addf %84, %87 : vector<8x1xf32>
      %c0_57 = arith.constant 0 : index
      %c0_58 = arith.constant 0 : index
      %89 = vector.load %arg10[%c0_57, %c0_58] : memref<8x1xf32, #tpu.memory_space<vmem>>, vector<8x1xf32>
      tpu.vector_store %arg10[%c0_57, %c0_58], %88 {strides = array<i32>} : memref<8x1xf32, #tpu.memory_space<vmem>>, vector<8x1xf32>,
      %c1_i32_59 = arith.constant 1 : i32
      %c0_60 = arith.constant 0 : index
      %c0_61 = arith.constant 0 : index
      %90 = vector.load %arg9[%c0_60, %c0_61] : memref<8x1xf32, #tpu.memory_space<vmem>>, vector<8x1xf32>
      %c0_62 = arith.constant 0 : index
      %c0_63 = arith.constant 0 : index
      %91 = vector.load %arg10[%c0_62, %c0_63] : memref<8x1xf32, #tpu.memory_space<vmem>>, vector<8x1xf32>
      %cst_64 = arith.constant 1.250000e-01 : f32
      %92 = vector.broadcast %cst_64 : f32 to vector<8x1xf32>
      %93 = arith.mulf %90, %92 : vector<8x1xf32>
      %cst_65 = arith.constant 1.250000e-01 : f32
      %94 = vector.broadcast %cst_65 : f32 to vector<8x1xf32>
      %95 = arith.mulf %91, %94 : vector<8x1xf32>
      %96 = arith.mulf %93, %93 : vector<8x1xf32>
      %97 = arith.subf %95, %96 : vector<8x1xf32>
      %cst_66 = arith.constant 0.000000e+00 : f32
      %98 = vector.broadcast %cst_66 : f32 to vector<8x1xf32>
      %99 = arith.maximumf %97, %98 : vector<8x1xf32>
      %cst_67 = arith.constant 9.99999974E-6 : f32
      %100 = vector.broadcast %cst_67 : f32 to vector<8x1xf32>
      %101 = arith.addf %99, %100 : vector<8x1xf32>
      %102 = math.rsqrt %101 : vector<8x1xf32>
      %103 = arith.mulf %55, %102 : vector<8x1xf32>
      %104 = arith.mulf %93, %103 : vector<8x1xf32>
      %105 = arith.subf %56, %104 : vector<8x1xf32>
      %c1_68 = arith.constant 1 : index
      %c0_69 = arith.constant 0 : index
      %c0_70 = arith.constant 0 : index
      %106 = vector.load %arg3[%c1_68, %c0_69, %c0_70] : memref<3x8x8xf32, #tpu.memory_space<vmem>>, vector<1x8x8xf32>
      %107 = vector.shape_cast %106 : vector<1x8x8xf32> to vector<8x8xf32>
      %c2 = arith.constant 2 : index
      %c0_71 = arith.constant 0 : index
      %c0_72 = arith.constant 0 : index
      %108 = vector.load %arg4[%c2, %c0_71, %c0_72] : memref<4x8x3xf32, #tpu.memory_space<vmem>>, vector<1x8x3xf32>
      %109 = vector.shape_cast %108 : vector<1x8x3xf32> to vector<8x3xf32>
      %110 = vector.extract_strided_slice %109 {offsets = [0, 0], sizes = [8, 1], strides = [1, 1]} : vector<8x3xf32> to vector<8x1xf32>
      %111 = vector.extract_strided_slice %109 {offsets = [0, 1], sizes = [8, 1], strides = [1, 1]} : vector<8x3xf32> to vector<8x1xf32>
      %112 = vector.extract_strided_slice %109 {offsets = [0, 2], sizes = [8, 1], strides = [1, 1]} : vector<8x3xf32> to vector<8x1xf32>
      %cst_73 = arith.constant 0.000000e+00 : f32
      %113 = vector.broadcast %cst_73 : f32 to vector<8x1xf32>
      %c0_74 = arith.constant 0 : index
      %c0_75 = arith.constant 0 : index
      %114 = vector.load %arg9[%c0_74, %c0_75] : memref<8x1xf32, #tpu.memory_space<vmem>>, vector<8x1xf32>
      tpu.vector_store %arg9[%c0_74, %c0_75], %113 {strides = array<i32>} : memref<8x1xf32, #tpu.memory_space<vmem>>, vector<8x1xf32>,
      %cst_76 = arith.constant 0.000000e+00 : f32
      %115 = vector.broadcast %cst_76 : f32 to vector<8x1xf32>
      %c0_77 = arith.constant 0 : index
      %c0_78 = arith.constant 0 : index
      %116 = vector.load %arg10[%c0_77, %c0_78] : memref<8x1xf32, #tpu.memory_space<vmem>>, vector<8x1xf32>
      tpu.vector_store %arg10[%c0_77, %c0_78], %115 {strides = array<i32>} : memref<8x1xf32, #tpu.memory_space<vmem>>, vector<8x1xf32>,
      %c0_i32_79 = arith.constant 0 : i32
      %c1_i32_80 = arith.constant 1 : i32
      %117 = arith.muli %c0_i32_79, %c1_i32_80 : i32
      %c0_i32_81 = arith.constant 0 : i32
      %118 = arith.addi %c0_i32_81, %117 : i32
      %119 = arith.index_cast %118 : i32 to index
      %c0_82 = arith.constant 0 : index
      %c0_83 = arith.constant 0 : index
      %120 = vector.load %arg8[%119, %c0_82, %c0_83] : memref<1x8x8xf32, #tpu.memory_space<vmem>>, vector<1x8x8xf32>
      %121 = vector.shape_cast %120 : vector<1x8x8xf32> to vector<8x8xf32>
      %122 = vector.broadcast %103 : vector<8x1xf32> to vector<8x8xf32>
      %123 = arith.mulf %121, %122 : vector<8x8xf32>
      %124 = vector.broadcast %105 : vector<8x1xf32> to vector<8x8xf32>
      %125 = arith.addf %123, %124 : vector<8x8xf32>
      %cst_84 = arith.constant dense<0.000000e+00> : vector<8x8xf32>
      %126 = tpu.matmul %107, %125, %cst_84 {dimension_numbers = #tpu.dot_dimension_numbers<[1], [0], [0], [1], [0, 0, 1, 1], [], []>} : vector<8x8xf32>, vector<8x8xf32>, vector<8x8xf32> -> vector<8x8xf32>
      %127 = vector.broadcast %110 : vector<8x1xf32> to vector<8x8xf32>
      %128 = arith.addf %126, %127 : vector<8x8xf32>
      %cst_85 = arith.constant 0.000000e+00 : f32
      %129 = vector.broadcast %cst_85 : f32 to vector<8x8xf32>
      %130 = arith.maximumf %128, %129 : vector<8x8xf32>
      %131 = arith.index_cast %118 : i32 to index
      %c0_86 = arith.constant 0 : index
      %c0_87 = arith.constant 0 : index
      %132 = vector.load %arg8[%131, %c0_86, %c0_87] : memref<1x8x8xf32, #tpu.memory_space<vmem>>, vector<1x8x8xf32>
      %133 = vector.shape_cast %132 : vector<1x8x8xf32> to vector<8x8xf32>
      %134 = vector.shape_cast %130 : vector<8x8xf32> to vector<1x8x8xf32>
      tpu.vector_store %arg8[%131, %c0_86, %c0_87], %134 {strides = array<i32>} : memref<1x8x8xf32, #tpu.memory_space<vmem>>, vector<1x8x8xf32>,
      %c0_88 = arith.constant 0 : index
      %c0_89 = arith.constant 0 : index
      %135 = vector.load %arg9[%c0_88, %c0_89] : memref<8x1xf32, #tpu.memory_space<vmem>>, vector<8x1xf32>
      %cst_90 = arith.constant dense<0.000000e+00> : vector<8xf32>
      %136 = vector.multi_reduction <add>, %130, %cst_90 [1] : vector<8x8xf32> to vector<8xf32>
      %137 = vector.shape_cast %136 : vector<8xf32> to vector<8x1xf32>
      %138 = arith.addf %135, %137 : vector<8x1xf32>
      %c0_91 = arith.constant 0 : index
      %c0_92 = arith.constant 0 : index
      %139 = vector.load %arg9[%c0_91, %c0_92] : memref<8x1xf32, #tpu.memory_space<vmem>>, vector<8x1xf32>
      tpu.vector_store %arg9[%c0_91, %c0_92], %138 {strides = array<i32>} : memref<8x1xf32, #tpu.memory_space<vmem>>, vector<8x1xf32>,
      %c0_93 = arith.constant 0 : index
      %c0_94 = arith.constant 0 : index
      %140 = vector.load %arg10[%c0_93, %c0_94] : memref<8x1xf32, #tpu.memory_space<vmem>>, vector<8x1xf32>
      %141 = arith.mulf %130, %130 : vector<8x8xf32>
      %cst_95 = arith.constant dense<0.000000e+00> : vector<8xf32>
      %142 = vector.multi_reduction <add>, %141, %cst_95 [1] : vector<8x8xf32> to vector<8xf32>
      %143 = vector.shape_cast %142 : vector<8xf32> to vector<8x1xf32>
      %144 = arith.addf %140, %143 : vector<8x1xf32>
      %c0_96 = arith.constant 0 : index
      %c0_97 = arith.constant 0 : index
      %145 = vector.load %arg10[%c0_96, %c0_97] : memref<8x1xf32, #tpu.memory_space<vmem>>, vector<8x1xf32>
      tpu.vector_store %arg10[%c0_96, %c0_97], %144 {strides = array<i32>} : memref<8x1xf32, #tpu.memory_space<vmem>>, vector<8x1xf32>,
      %c1_i32_98 = arith.constant 1 : i32
      %c0_99 = arith.constant 0 : index
      %c0_100 = arith.constant 0 : index
      %146 = vector.load %arg9[%c0_99, %c0_100] : memref<8x1xf32, #tpu.memory_space<vmem>>, vector<8x1xf32>
      %c0_101 = arith.constant 0 : index
      %c0_102 = arith.constant 0 : index
      %147 = vector.load %arg10[%c0_101, %c0_102] : memref<8x1xf32, #tpu.memory_space<vmem>>, vector<8x1xf32>
      %cst_103 = arith.constant 1.250000e-01 : f32
      %148 = vector.broadcast %cst_103 : f32 to vector<8x1xf32>
      %149 = arith.mulf %146, %148 : vector<8x1xf32>
      %cst_104 = arith.constant 1.250000e-01 : f32
      %150 = vector.broadcast %cst_104 : f32 to vector<8x1xf32>
      %151 = arith.mulf %147, %150 : vector<8x1xf32>
      %152 = arith.mulf %149, %149 : vector<8x1xf32>
      %153 = arith.subf %151, %152 : vector<8x1xf32>
      %cst_105 = arith.constant 0.000000e+00 : f32
      %154 = vector.broadcast %cst_105 : f32 to vector<8x1xf32>
      %155 = arith.maximumf %153, %154 : vector<8x1xf32>
      %cst_106 = arith.constant 9.99999974E-6 : f32
      %156 = vector.broadcast %cst_106 : f32 to vector<8x1xf32>
      %157 = arith.addf %155, %156 : vector<8x1xf32>
      %158 = math.rsqrt %157 : vector<8x1xf32>
      %159 = arith.mulf %111, %158 : vector<8x1xf32>
      %160 = arith.mulf %149, %159 : vector<8x1xf32>
      %161 = arith.subf %112, %160 : vector<8x1xf32>
      %c2_107 = arith.constant 2 : index
      %c0_108 = arith.constant 0 : index
      %c0_109 = arith.constant 0 : index
      %162 = vector.load %arg3[%c2_107, %c0_108, %c0_109] : memref<3x8x8xf32, #tpu.memory_space<vmem>>, vector<1x8x8xf32>
      %163 = vector.shape_cast %162 : vector<1x8x8xf32> to vector<8x8xf32>
      %c3 = arith.constant 3 : index
      %c0_110 = arith.constant 0 : index
      %c0_111 = arith.constant 0 : index
      %164 = vector.load %arg4[%c3, %c0_110, %c0_111] : memref<4x8x3xf32, #tpu.memory_space<vmem>>, vector<1x8x3xf32>
      %165 = vector.shape_cast %164 : vector<1x8x3xf32> to vector<8x3xf32>
      %166 = vector.extract_strided_slice %165 {offsets = [0, 0], sizes = [8, 1], strides = [1, 1]} : vector<8x3xf32> to vector<8x1xf32>
      %167 = vector.extract_strided_slice %165 {offsets = [0, 1], sizes = [8, 1], strides = [1, 1]} : vector<8x3xf32> to vector<8x1xf32>
      %168 = vector.extract_strided_slice %165 {offsets = [0, 2], sizes = [8, 1], strides = [1, 1]} : vector<8x3xf32> to vector<8x1xf32>
      %cst_112 = arith.constant 0.000000e+00 : f32
      %169 = vector.broadcast %cst_112 : f32 to vector<8x1xf32>
      %c0_113 = arith.constant 0 : index
      %c0_114 = arith.constant 0 : index
      %170 = vector.load %arg9[%c0_113, %c0_114] : memref<8x1xf32, #tpu.memory_space<vmem>>, vector<8x1xf32>
      tpu.vector_store %arg9[%c0_113, %c0_114], %169 {strides = array<i32>} : memref<8x1xf32, #tpu.memory_space<vmem>>, vector<8x1xf32>,
      %cst_115 = arith.constant 0.000000e+00 : f32
      %171 = vector.broadcast %cst_115 : f32 to vector<8x1xf32>
      %c0_116 = arith.constant 0 : index
      %c0_117 = arith.constant 0 : index
      %172 = vector.load %arg10[%c0_116, %c0_117] : memref<8x1xf32, #tpu.memory_space<vmem>>, vector<8x1xf32>
      tpu.vector_store %arg10[%c0_116, %c0_117], %171 {strides = array<i32>} : memref<8x1xf32, #tpu.memory_space<vmem>>, vector<8x1xf32>,
      %c0_i32_118 = arith.constant 0 : i32
      %c1_i32_119 = arith.constant 1 : i32
      %173 = arith.muli %c0_i32_118, %c1_i32_119 : i32
      %c0_i32_120 = arith.constant 0 : i32
      %174 = arith.addi %c0_i32_120, %173 : i32
      %175 = arith.index_cast %174 : i32 to index
      %c0_121 = arith.constant 0 : index
      %c0_122 = arith.constant 0 : index
      %176 = vector.load %arg8[%175, %c0_121, %c0_122] : memref<1x8x8xf32, #tpu.memory_space<vmem>>, vector<1x8x8xf32>
      %177 = vector.shape_cast %176 : vector<1x8x8xf32> to vector<8x8xf32>
      %178 = vector.broadcast %159 : vector<8x1xf32> to vector<8x8xf32>
      %179 = arith.mulf %177, %178 : vector<8x8xf32>
      %180 = vector.broadcast %161 : vector<8x1xf32> to vector<8x8xf32>
      %181 = arith.addf %179, %180 : vector<8x8xf32>
      %cst_123 = arith.constant dense<0.000000e+00> : vector<8x8xf32>
      %182 = tpu.matmul %163, %181, %cst_123 {dimension_numbers = #tpu.dot_dimension_numbers<[1], [0], [0], [1], [0, 0, 1, 1], [], []>} : vector<8x8xf32>, vector<8x8xf32>, vector<8x8xf32> -> vector<8x8xf32>
      %183 = vector.broadcast %166 : vector<8x1xf32> to vector<8x8xf32>
      %184 = arith.addf %182, %183 : vector<8x8xf32>
      %cst_124 = arith.constant 0.000000e+00 : f32
      %185 = vector.broadcast %cst_124 : f32 to vector<8x8xf32>
      %186 = arith.maximumf %184, %185 : vector<8x8xf32>
      %187 = arith.index_cast %174 : i32 to index
      %c0_125 = arith.constant 0 : index
      %c0_126 = arith.constant 0 : index
      %188 = vector.load %arg8[%187, %c0_125, %c0_126] : memref<1x8x8xf32, #tpu.memory_space<vmem>>, vector<1x8x8xf32>
      %189 = vector.shape_cast %188 : vector<1x8x8xf32> to vector<8x8xf32>
      %190 = vector.shape_cast %186 : vector<8x8xf32> to vector<1x8x8xf32>
      tpu.vector_store %arg8[%187, %c0_125, %c0_126], %190 {strides = array<i32>} : memref<1x8x8xf32, #tpu.memory_space<vmem>>, vector<1x8x8xf32>,
      %c0_127 = arith.constant 0 : index
      %c0_128 = arith.constant 0 : index
      %191 = vector.load %arg9[%c0_127, %c0_128] : memref<8x1xf32, #tpu.memory_space<vmem>>, vector<8x1xf32>
      %cst_129 = arith.constant dense<0.000000e+00> : vector<8xf32>
      %192 = vector.multi_reduction <add>, %186, %cst_129 [1] : vector<8x8xf32> to vector<8xf32>
      %193 = vector.shape_cast %192 : vector<8xf32> to vector<8x1xf32>
      %194 = arith.addf %191, %193 : vector<8x1xf32>
      %c0_130 = arith.constant 0 : index
      %c0_131 = arith.constant 0 : index
      %195 = vector.load %arg9[%c0_130, %c0_131] : memref<8x1xf32, #tpu.memory_space<vmem>>, vector<8x1xf32>
      tpu.vector_store %arg9[%c0_130, %c0_131], %194 {strides = array<i32>} : memref<8x1xf32, #tpu.memory_space<vmem>>, vector<8x1xf32>,
      %c0_132 = arith.constant 0 : index
      %c0_133 = arith.constant 0 : index
      %196 = vector.load %arg10[%c0_132, %c0_133] : memref<8x1xf32, #tpu.memory_space<vmem>>, vector<8x1xf32>
      %197 = arith.mulf %186, %186 : vector<8x8xf32>
      %cst_134 = arith.constant dense<0.000000e+00> : vector<8xf32>
      %198 = vector.multi_reduction <add>, %197, %cst_134 [1] : vector<8x8xf32> to vector<8xf32>
      %199 = vector.shape_cast %198 : vector<8xf32> to vector<8x1xf32>
      %200 = arith.addf %196, %199 : vector<8x1xf32>
      %c0_135 = arith.constant 0 : index
      %c0_136 = arith.constant 0 : index
      %201 = vector.load %arg10[%c0_135, %c0_136] : memref<8x1xf32, #tpu.memory_space<vmem>>, vector<8x1xf32>
      tpu.vector_store %arg10[%c0_135, %c0_136], %200 {strides = array<i32>} : memref<8x1xf32, #tpu.memory_space<vmem>>, vector<8x1xf32>,
      %c1_i32_137 = arith.constant 1 : i32
      %c0_138 = arith.constant 0 : index
      %c0_139 = arith.constant 0 : index
      %202 = vector.load %arg9[%c0_138, %c0_139] : memref<8x1xf32, #tpu.memory_space<vmem>>, vector<8x1xf32>
      %c0_140 = arith.constant 0 : index
      %c0_141 = arith.constant 0 : index
      %203 = vector.load %arg10[%c0_140, %c0_141] : memref<8x1xf32, #tpu.memory_space<vmem>>, vector<8x1xf32>
      %cst_142 = arith.constant 1.250000e-01 : f32
      %204 = vector.broadcast %cst_142 : f32 to vector<8x1xf32>
      %205 = arith.mulf %202, %204 : vector<8x1xf32>
      %cst_143 = arith.constant 1.250000e-01 : f32
      %206 = vector.broadcast %cst_143 : f32 to vector<8x1xf32>
      %207 = arith.mulf %203, %206 : vector<8x1xf32>
      %208 = arith.mulf %205, %205 : vector<8x1xf32>
      %209 = arith.subf %207, %208 : vector<8x1xf32>
      %cst_144 = arith.constant 0.000000e+00 : f32
      %210 = vector.broadcast %cst_144 : f32 to vector<8x1xf32>
      %211 = arith.maximumf %209, %210 : vector<8x1xf32>
      %cst_145 = arith.constant 9.99999974E-6 : f32
      %212 = vector.broadcast %cst_145 : f32 to vector<8x1xf32>
      %213 = arith.addf %211, %212 : vector<8x1xf32>
      %214 = math.rsqrt %213 : vector<8x1xf32>
      %215 = arith.mulf %167, %214 : vector<8x1xf32>
      %216 = arith.mulf %205, %215 : vector<8x1xf32>
      %217 = arith.subf %168, %216 : vector<8x1xf32>
      %c0_146 = arith.constant 0 : index
      %c0_147 = arith.constant 0 : index
      %218 = vector.load %arg5[%c0_146, %c0_147] : memref<8x10xf32, #tpu.memory_space<vmem>>, vector<8x10xf32>
      %c0_148 = arith.constant 0 : index
      %c0_149 = arith.constant 0 : index
      %219 = vector.load %arg6[%c0_148, %c0_149] : memref<1x10xf32, #tpu.memory_space<vmem>>, vector<1x10xf32>
      %c0_i32_150 = arith.constant 0 : i32
      %c1_i32_151 = arith.constant 1 : i32
      %220 = arith.muli %c0_i32_150, %c1_i32_151 : i32
      %c0_i32_152 = arith.constant 0 : i32
      %221 = arith.addi %c0_i32_152, %220 : i32
      %222 = arith.index_cast %221 : i32 to index
      %c0_153 = arith.constant 0 : index
      %c0_154 = arith.constant 0 : index
      %223 = vector.load %arg8[%222, %c0_153, %c0_154] : memref<1x8x8xf32, #tpu.memory_space<vmem>>, vector<1x8x8xf32>
      %224 = vector.shape_cast %223 : vector<1x8x8xf32> to vector<8x8xf32>
      %225 = vector.broadcast %215 : vector<8x1xf32> to vector<8x8xf32>
      %226 = arith.mulf %224, %225 : vector<8x8xf32>
      %227 = vector.broadcast %217 : vector<8x1xf32> to vector<8x8xf32>
      %228 = arith.addf %226, %227 : vector<8x8xf32>
      %229 = tpu.transpose %228, [1, 0] : vector<8x8xf32> -> vector<8x8xf32>
      %cst_155 = arith.constant dense<0.000000e+00> : vector<8x10xf32>
      %230 = tpu.matmul %229, %218, %cst_155 {dimension_numbers = #tpu.dot_dimension_numbers<[1], [0], [0], [1], [0, 0, 1, 1], [], []>} : vector<8x8xf32>, vector<8x10xf32>, vector<8x10xf32> -> vector<8x10xf32>
      %231 = vector.broadcast %219 : vector<1x10xf32> to vector<8x10xf32>
      %232 = arith.addf %230, %231 : vector<8x10xf32>
      %c8_i32 = arith.constant 8 : i32
      %233 = arith.muli %221, %c8_i32 : i32
      %234 = tpu.assume_multiple %233, 8 : i32
      %235 = arith.index_cast %234 : i32 to index
      %c0_156 = arith.constant 0 : index
      %236 = vector.load %arg7[%235, %c0_156] : memref<8x10xf32, #tpu.memory_space<vmem>>, vector<8x10xf32>
      tpu.vector_store %arg7[%235, %c0_156], %232 {strides = array<i32>} : memref<8x10xf32, #tpu.memory_space<vmem>>, vector<8x10xf32>,
      %c1_i32_157 = arith.constant 1 : i32
    } else {
    }
    return
  }
  func.func @transform_0(%arg0: i32) -> (i32, i32) {
    %c0_i32 = arith.constant 0 : i32
    %c0_i32_0 = arith.constant 0 : i32
    return %arg0, %c0_i32 : i32, i32
  }
  func.func @transform_1(%arg0: i32) -> (i32, i32) {
    %c0_i32 = arith.constant 0 : i32
    %c0_i32_0 = arith.constant 0 : i32
    %c0_i32_1 = arith.constant 0 : i32
    return %c0_i32, %c0_i32_0 : i32, i32
  }
  func.func @transform_2(%arg0: i32) -> (i32, i32, i32) {
    %c0_i32 = arith.constant 0 : i32
    %c0_i32_0 = arith.constant 0 : i32
    %c0_i32_1 = arith.constant 0 : i32
    %c0_i32_2 = arith.constant 0 : i32
    return %c0_i32, %c0_i32_0, %c0_i32_1 : i32, i32, i32
  }
  func.func @transform_3(%arg0: i32) -> (i32, i32, i32) {
    %c0_i32 = arith.constant 0 : i32
    %c0_i32_0 = arith.constant 0 : i32
    %c0_i32_1 = arith.constant 0 : i32
    %c0_i32_2 = arith.constant 0 : i32
    return %c0_i32, %c0_i32_0, %c0_i32_1 : i32, i32, i32
  }
  func.func @transform_4(%arg0: i32) -> (i32, i32) {
    %c0_i32 = arith.constant 0 : i32
    %c0_i32_0 = arith.constant 0 : i32
    %c0_i32_1 = arith.constant 0 : i32
    return %c0_i32, %c0_i32_0 : i32, i32
  }
  func.func @transform_5(%arg0: i32) -> (i32, i32) {
    %c0_i32 = arith.constant 0 : i32
    %c0_i32_0 = arith.constant 0 : i32
    %c0_i32_1 = arith.constant 0 : i32
    return %c0_i32, %c0_i32_0 : i32, i32
  }
  func.func @transform_6(%arg0: i32) -> (i32, i32) {
    %c0_i32 = arith.constant 0 : i32
    %c0_i32_0 = arith.constant 0 : i32
    %c0_i32_1 = arith.constant 0 : i32
    return %c0_i32, %c0_i32_0 : i32, i32
  }
}

</mosaic_0001>

<llo_original>
// kernel: tpu_custom_call.1
$region0: #{tpu_custom_call.1}
  #allocation0 [shape = 'u32[]', space=smem, size = 0x4, offset = 0x4, fixed_abs, tag = 'smem constant byte address 0x4 - core index']
  #allocation1 [shape = 'u32[144,128]{1,0:T(1,128)}', space=vmem, size = 0x12000, scoped, tag = 'internal scratch']
  #allocation2 [shape = 'f32[1,8,8]{2,1,0:T(8,128)}', space=vmem, size = 0x1000, scoped, tag = 'scratch operand']
  #allocation3 [shape = 'f32[8,1]{1,0:T(8,128)}', space=vmem, size = 0x1000, scoped, tag = 'scratch operand']
  #allocation4 [shape = 'f32[8,1]{1,0:T(8,128)}', space=vmem, size = 0x1000, scoped, tag = 'scratch operand']
  %s0 = inlined_call_operand.vmem [shape: f32[8,16], index: 0, kind: input, shape index: {}]
  %s1 = inlined_call_operand.vmem [shape: f32[16,8], index: 1, kind: input, shape index: {}]
  %s2 = inlined_call_operand.vmem [shape: f32[3,8,8], index: 2, kind: input, shape index: {}]
  %s3 = inlined_call_operand.vmem [shape: f32[4,8,3], index: 3, kind: input, shape index: {}]
  %s4 = inlined_call_operand.vmem [shape: f32[8,10], index: 4, kind: input, shape index: {}]
  %s5 = inlined_call_operand.vmem [shape: f32[1,10], index: 5, kind: input, shape index: {}]
  %s6 = inlined_call_operand.hbm [shape: f32[8,10], index: 6, kind: output, shape index: {}]
  %s7 = sld [smem:[#allocation0]]
  $region42: #{tpu_custom_call.1} parent=0
    _
  %s9 = ssub.s32 1, %s7
  %s10 = scalar_select 0, %s9, %s7
  $region1: #{tpu_custom_call.1} parent=0
    #allocation5 [shape = 'u8[4096]{0}', space=vmem, size = 0x1000, scoped, tag = 'output window, operand 0, single buffered']
    #allocation6 [shape = 's32[1]{0}', space=sflag, size = 0x4, scoped, tag = 'scoped memory for tpu_custom_call.1']
    %11 = vsyncpa [#allocation6], 0
    // Predicated region
    $region2: #{tpu_custom_call.1} parent=1 // pred_check
      _
    $region3: #{tpu_custom_call.1} parent=1 // pred_check_branch
      %13 = sbr.rel (0) target = $region5
    $region4: #{tpu_custom_call.1} parent=1 // pred_region
      _
    $region5: #{tpu_custom_call.1} parent=1 // pred_fallthru
      _
    // Predicated region
    $region6: #{tpu_custom_call.1} parent=1 // pred_check
      _
    $region7: #{tpu_custom_call.1} parent=1 // pred_check_branch
      %15 = sbr.rel (0) target = $region9
    $region8: #{tpu_custom_call.1} parent=1 // pred_region
      _
    $region9: #{tpu_custom_call.1} parent=1 // pred_fallthru
      _
    // Predicated region
    $region10: #{tpu_custom_call.1} parent=1 // pred_check
      _
    $region11: #{tpu_custom_call.1} parent=1 // pred_check_branch
      %17 = sbr.rel (0) target = $region13
    $region12: #{tpu_custom_call.1} parent=1 // pred_region
      _
    $region13: #{tpu_custom_call.1} parent=1 // pred_fallthru
      _
    // Predicated region
    $region14: #{tpu_custom_call.1} parent=1 // pred_check
      _
    $region15: #{tpu_custom_call.1} parent=1 // pred_check_branch
      %19 = sbr.rel (0) target = $region17
    $region16: #{tpu_custom_call.1} parent=1 // pred_region
      _
    $region17: #{tpu_custom_call.1} parent=1 // pred_fallthru
      _
    // Predicated region
    $region18: #{tpu_custom_call.1} parent=1 // pred_check
      _
    $region19: #{tpu_custom_call.1} parent=1 // pred_check_branch
      %21 = sbr.rel (0) target = $region21
    $region20: #{tpu_custom_call.1} parent=1 // pred_region
      _
    $region21: #{tpu_custom_call.1} parent=1 // pred_fallthru
      _
    // Predicated region
    $region22: #{tpu_custom_call.1} parent=1 // pred_check
      _
    $region23: #{tpu_custom_call.1} parent=1 // pred_check_branch
      %23 = sbr.rel (0) target = $region25
    $region24: #{tpu_custom_call.1} parent=1 // pred_region
      _
    $region25: #{tpu_custom_call.1} parent=1 // pred_fallthru
      _
    %p24 = scmp.eq.s32.totalorder 0, 0
    // Predicated region
    $region26: #{tpu_custom_call.1} parent=1 // pred_check
      %p25 = pneg %p24
    $region27: #{tpu_custom_call.1} parent=1 // pred_check_branch
      %27 = sbr.rel (%p25) target = $region29
    $region28: #{tpu_custom_call.1} parent=1 // pred_region
      %vm28 = vcmask 7168
      %29 = vst.msk [vmem:[#allocation3] sm:$0xff] %vm28, 0.0
      %30 = vst.msk [vmem:[#allocation4] sm:$0xff] %vm28, 0.0
    $region29: #{tpu_custom_call.1} parent=1 // pred_fallthru
      _
    %v31 = vld [vmem:[%s3] sm:$0xff]
    %v32 = vld [vmem:[%s0] sm:$0xff]
    %v33 = vld [vmem:[%s1] sm:$0xff]
    %v34 = vld [vmem:[%s1 + $0x8] sm:$0xff]
    %vm35 = vcmask 130048
    %v37 = vsel %vm35, %v32, 0
    %39 = vmatprep.subr.mxu0 0.0
    %40 = vmatpush1.msra.mxu0 %v33
    %41 = vmatprep.subr.mxu0 0.0
    %42 = vmatpush1.msra.mxu0 %v34
    %43 = vmatprep.subr.mxu0 0.0
    %44 = vmatpush1.msra.mxu0 0.0
    %45 = vmatprep.subr.mxu0 0.0
    %46 = vmatpush1.msra.mxu0 0.0
    %47 = vmatprep.subr.mxu0 0.0
    %48 = vmatpush1.msra.mxu0 0.0
    %49 = vmatprep.subr.mxu0 0.0
    %50 = vmatpush1.msra.mxu0 0.0
    %51 = vmatprep.subr.mxu0 0.0
    %52 = vmatpush1.msra.mxu0 0.0
    %53 = vmatprep.subr.mxu0 0.0
    %54 = vmatpush1.msra.mxu0 0.0
    %55 = vmatprep.subr.mxu0 0.0
    %56 = vmatpush1.msra.mxu0 0.0
    %57 = vmatprep.subr.mxu0 0.0
    %58 = vmatpush1.msra.mxu0 0.0
    %59 = vmatprep.subr.mxu0 0.0
    %60 = vmatpush1.msra.mxu0 0.0
    %61 = vmatprep.subr.mxu0 0.0
    %62 = vmatpush1.msra.mxu0 0.0
    %63 = vmatprep.subr.mxu0 0.0
    %64 = vmatpush1.msra.mxu0 0.0
    %65 = vmatprep.subr.mxu0 0.0
    %66 = vmatpush1.msra.mxu0 0.0
    %67 = vmatprep.subr.mxu0 0.0
    %68 = vmatpush1.msra.mxu0 0.0
    %69 = vmatprep.subr.mxu0 0.0
    %70 = vmatpush1.msra.mxu0 0.0
    %71 = vmatprep.subr.mxu0 0.0
    %72 = vmatpush1.msra.mxu0 0.0
    %73 = vmatprep.subr.mxu0 0.0
    %74 = vmatpush1.msra.mxu0 0.0
    %75 = vmatprep.subr.mxu0 0.0
    %76 = vmatpush1.msra.mxu0 0.0
    %77 = vmatprep.subr.mxu0 0.0
    %78 = vmatpush1.msra.mxu0 0.0
    %79 = vmatprep.subr.mxu0 0.0
    %80 = vmatpush1.msra.mxu0 0.0
    %81 = vmatprep.subr.mxu0 0.0
    %82 = vmatpush1.msra.mxu0 0.0
    %83 = vmatprep.subr.mxu0 0.0
    %84 = vmatpush1.msra.mxu0 0.0
    %85 = vmatprep.subr.mxu0 0.0
    %86 = vmatpush1.msra.mxu0 0.0
    %87 = vmatprep.subr.mxu0 0.0
    %88 = vmatpush1.msra.mxu0 0.0
    %89 = vmatprep.subr.mxu0 0.0
    %90 = vmatpush1.msra.mxu0 0.0
    %91 = vmatprep.subr.mxu0 0.0
    %92 = vmatpush1.msra.mxu0 0.0
    %93 = vmatprep.subr.mxu0 0.0
    %94 = vmatpush1.msra.mxu0 0.0
    %95 = vmatprep.subr.mxu0 0.0
    %96 = vmatpush1.msra.mxu0 0.0
    %97 = vmatprep.subr.mxu0 0.0
    %98 = vmatpush1.msra.mxu0 0.0
    %99 = vmatprep.subr.mxu0 0.0
    %100 = vmatpush1.msra.mxu0 0.0
    %101 = vmatprep.subr.mxu0 0.0
    %102 = vmatpush1.msra.mxu0 0.0
    %103 = vmatprep.mubr.f32.mxu0 0.0
    %104 = vmatmul.mubr.f32.gmra.mrb[0].mxu0 %v37
    %v105 = vpop.f32.mrb[0].mxu0
    %v106 = vadd.f32 0.0, %v105
    %v107 = vpop.f32.mrb[0].mxu0
    %108 = vdwg.mxu0
    %109 = vxpose.xlu0.b32.start [1/16] %v106, 128
    %110 = vxpose.xlu0.b32.cont [2/16] 0.0, 128
    %111 = vxpose.xlu0.b32.cont [3/16] 0.0, 128
    %112 = vxpose.xlu0.b32.cont [4/16] 0.0, 128
    %113 = vxpose.xlu0.b32.cont [5/16] 0.0, 128
    %114 = vxpose.xlu0.b32.cont [6/16] 0.0, 128
    %115 = vxpose.xlu0.b32.cont [7/16] 0.0, 128
    %116 = vxpose.xlu0.b32.cont [8/16] 0.0, 128
    %117 = vxpose.xlu0.b32.cont [9/16] 0.0, 128
    %118 = vxpose.xlu0.b32.cont [10/16] 0.0, 128
    %119 = vxpose.xlu0.b32.cont [11/16] 0.0, 128
    %120 = vxpose.xlu0.b32.cont [12/16] 0.0, 128
    %121 = vxpose.xlu0.b32.cont [13/16] 0.0, 128
    %122 = vxpose.xlu0.b32.cont [14/16] 0.0, 128
    %123 = vxpose.xlu0.b32.cont [15/16] 0.0, 128
    %124 = vxpose.xlu0.b32.end [16/16] 0.0, 128
    %v125 = vpop.trf.xlu0
    %v126 = vpop.trf.xlu0
    %v127 = vpop.trf.xlu0
    %v128 = vpop.trf.xlu0
    %v129 = vpop.trf.xlu0
    %v130 = vpop.trf.xlu0
    %v131 = vpop.trf.xlu0
    %v132 = vpop.trf.xlu0
    %v133 = vpop.trf.xlu0
    %v134 = vpop.trf.xlu0
    %v135 = vpop.trf.xlu0
    %v136 = vpop.trf.xlu0
    %v137 = vpop.trf.xlu0
    %v138 = vpop.trf.xlu0
    %v139 = vpop.trf.xlu0
    %v140 = vpop.trf.xlu0
    %142 = vset.pattern.permute.xlu0 0
    %143 = vperm.xlu0 %142, %v31
    %v144 = vpop.permute.xlu0 %143
    %v146 = vadd.f32 %v125, %v144
    %v147 = vmax.f32 %v146, 0.0
    %v148 = vld [vmem:[#allocation3] sm:$0xff]
    %vm149 = vcmask 64512
    %v150 = vsel %vm149, %v147, 0.0
    %151 = vadd.xlane.f32.xlu0 %v150
    %v152 = vpop.xlane.xlu0 %151
    %v153 = vadd.f32 %v148, %v152
    %vm154 = vcmask 7168
    %155 = vst.msk [vmem:[#allocation3] sm:$0xff] %vm154, %v153
    %v156 = vld [vmem:[#allocation4] sm:$0xff]
    %v157 = vmul.f32 %v147, %v147
    %v158 = vsel %vm149, %v157, 0.0
    %159 = vadd.xlane.f32.xlu0 %v158
    %v160 = vpop.xlane.xlu0 %159
    %v161 = vadd.f32 %v156, %v160
    %162 = vst.msk [vmem:[#allocation4] sm:$0xff] %vm154, %v161
    %s163 = smul.u32 0, 8
    %s164 = scalar_lea.vmem [#allocation2], %s163
    %165 = vst.msk [vmem:[%s164] sm:$0xff] %vm149, %v147
    // Predicated region
    $region30: #{tpu_custom_call.1} parent=1 // pred_check
      %p166 = pneg %p24
    $region31: #{tpu_custom_call.1} parent=1 // pred_check_branch
      %168 = sbr.rel (%p166) target = $region33
    $region32: #{tpu_custom_call.1} parent=1 // pred_region
      %v169 = vld [vmem:[#allocation3] sm:$0xff]
      %v170 = vld [vmem:[#allocation4] sm:$0xff]
      %v171 = vmul.f32 %v169, 0.125
      %v172 = vmul.f32 %v170, 0.125
      %v173 = vmul.f32 %v171, %v171
      %v174 = vsub.f32 %v172, %v173
      %v175 = vmax.f32 %v174, 0.0
      %v176 = vadd.f32 %v175, 1e-05
      %v177 = vrsqrt.pop %v176
      %179 = vrot.lane.b32.xlu0 %v177, 1
      %v180 = vpop.permute.xlu0 %179
      %v182 = vmul.f32 %v31, %v180
      %184 = vrot.lane.b32.xlu0 %v182, 127
      %v185 = vpop.permute.xlu0 %184
      %v187 = vmul.f32 %v171, %v185
      %189 = vrot.lane.b32.xlu0 %v187, 2
      %v190 = vpop.permute.xlu0 %189
      %v192 = vsub.f32 %v31, %v190
      %v193 = vld [vmem:[%s2] sm:$0xff]
      %s194 = scalar_lea.vmem %s3, 8
      %v195 = vld [vmem:[%s194] sm:$0xff]
      %196 = vst.msk [vmem:[#allocation3] sm:$0xff] %vm154, 0.0
      %197 = vst.msk [vmem:[#allocation4] sm:$0xff] %vm154, 0.0
      %v198 = vld [vmem:[#allocation2] sm:$0xff]
      %199 = vset.pattern.permute.xlu0 1
      %200 = vperm.xlu0 %199, %v182
      %v201 = vpop.permute.xlu0 %200
      %v203 = vmul.f32 %v198, %v201
      %205 = vset.pattern.permute.xlu0 2
      %206 = vperm.xlu0 %205, %v192
      %v207 = vpop.permute.xlu0 %206
      %v209 = vadd.f32 %v203, %v207
      %211 = vset.pattern.permute.xlu0 0
      %212 = vperm.xlu0 %211, %v195
      %v213 = vpop.permute.xlu0 %212
      %v216 = vsel %vm149, %v193, 0
      %218 = vmatprep.subr.mxu0 0.0
      %219 = vmatpush1.msra.mxu0 %v209
      %220 = vmatprep.subr.mxu0 0.0
      %221 = vmatpush1.msra.mxu0 0.0
      %222 = vmatprep.subr.mxu0 0.0
      %223 = vmatpush1.msra.mxu0 0.0
      %224 = vmatprep.subr.mxu0 0.0
      %225 = vmatpush1.msra.mxu0 0.0
      %226 = vmatprep.subr.mxu0 0.0
      %227 = vmatpush1.msra.mxu0 0.0
      %228 = vmatprep.subr.mxu0 0.0
      %229 = vmatpush1.msra.mxu0 0.0
      %230 = vmatprep.subr.mxu0 0.0
      %231 = vmatpush1.msra.mxu0 0.0
      %232 = vmatprep.subr.mxu0 0.0
      %233 = vmatpush1.msra.mxu0 0.0
      %234 = vmatprep.subr.mxu0 0.0
      %235 = vmatpush1.msra.mxu0 0.0
      %236 = vmatprep.subr.mxu0 0.0
      %237 = vmatpush1.msra.mxu0 0.0
      %238 = vmatprep.subr.mxu0 0.0
      %239 = vmatpush1.msra.mxu0 0.0
      %240 = vmatprep.subr.mxu0 0.0
      %241 = vmatpush1.msra.mxu0 0.0
      %242 = vmatprep.subr.mxu0 0.0
      %243 = vmatpush1.msra.mxu0 0.0
      %244 = vmatprep.subr.mxu0 0.0
      %245 = vmatpush1.msra.mxu0 0.0
      %246 = vmatprep.subr.mxu0 0.0
      %247 = vmatpush1.msra.mxu0 0.0
      %248 = vmatprep.subr.mxu0 0.0
      %249 = vmatpush1.msra.mxu0 0.0
      %250 = vmatprep.subr.mxu0 0.0
      %251 = vmatpush1.msra.mxu0 0.0
      %252 = vmatprep.subr.mxu0 0.0
      %253 = vmatpush1.msra.mxu0 0.0
      %254 = vmatprep.subr.mxu0 0.0
      %255 = vmatpush1.msra.mxu0 0.0
      %256 = vmatprep.subr.mxu0 0.0
      %257 = vmatpush1.msra.mxu0 0.0
      %258 = vmatprep.subr.mxu0 0.0
      %259 = vmatpush1.msra.mxu0 0.0
      %260 = vmatprep.subr.mxu0 0.0
      %261 = vmatpush1.msra.mxu0 0.0
      %262 = vmatprep.subr.mxu0 0.0
      %263 = vmatpush1.msra.mxu0 0.0
      %264 = vmatprep.subr.mxu0 0.0
      %265 = vmatpush1.msra.mxu0 0.0
      %266 = vmatprep.subr.mxu0 0.0
      %267 = vmatpush1.msra.mxu0 0.0
      %268 = vmatprep.subr.mxu0 0.0
      %269 = vmatpush1.msra.mxu0 0.0
      %270 = vmatprep.subr.mxu0 0.0
      %271 = vmatpush1.msra.mxu0 0.0
      %272 = vmatprep.subr.mxu0 0.0
      %273 = vmatpush1.msra.mxu0 0.0
      %274 = vmatprep.subr.mxu0 0.0
      %275 = vmatpush1.msra.mxu0 0.0
      %276 = vmatprep.subr.mxu0 0.0
      %277 = vmatpush1.msra.mxu0 0.0
      %278 = vmatprep.subr.mxu0 0.0
      %279 = vmatpush1.msra.mxu0 0.0
      %280 = vmatprep.subr.mxu0 0.0
      %281 = vmatpush1.msra.mxu0 0.0
      %282 = vmatprep.mubr.f32.mxu0 0.0
      %283 = vmatmul.mubr.f32.gmra.mrb[0].mxu0 %v216
      %v284 = vpop.f32.mrb[0].mxu0
      %v285 = vadd.f32 %v213, %v284
      %v286 = vpop.f32.mrb[0].mxu0
      %287 = vdwg.mxu0
      %v288 = vmax.f32 %v285, 0.0
      %289 = vst.msk [vmem:[#allocation2] sm:$0xff] %vm149, %v288
      %v290 = vld [vmem:[#allocation3] sm:$0xff]
      %v291 = vsel %vm149, %v288, 0.0
      %292 = vadd.xlane.f32.xlu0 %v291
      %v293 = vpop.xlane.xlu0 %292
      %v294 = vadd.f32 %v290, %v293
      %295 = vst.msk [vmem:[#allocation3] sm:$0xff] %vm154, %v294
      %v296 = vld [vmem:[#allocation4] sm:$0xff]
      %v297 = vmul.f32 %v288, %v288
      %v298 = vsel %vm149, %v297, 0.0
      %299 = vadd.xlane.f32.xlu0 %v298
      %v300 = vpop.xlane.xlu0 %299
      %v301 = vadd.f32 %v296, %v300
      %302 = vst.msk [vmem:[#allocation4] sm:$0xff] %vm154, %v301
      %v303 = vld [vmem:[#allocation3] sm:$0xff]
      %v304 = vld [vmem:[#allocation4] sm:$0xff]
      %v305 = vmul.f32 %v303, 0.125
      %v306 = vmul.f32 %v304, 0.125
      %v307 = vmul.f32 %v305, %v305
      %v308 = vsub.f32 %v306, %v307
      %v309 = vmax.f32 %v308, 0.0
      %v310 = vadd.f32 %v309, 1e-05
      %v311 = vrsqrt.pop %v310
      %313 = vrot.lane.b32.xlu0 %v311, 1
      %v314 = vpop.permute.xlu0 %313
      %v316 = vmul.f32 %v195, %v314
      %318 = vrot.lane.b32.xlu0 %v316, 127
      %v319 = vpop.permute.xlu0 %318
      %v321 = vmul.f32 %v305, %v319
      %323 = vrot.lane.b32.xlu0 %v321, 2
      %v324 = vpop.permute.xlu0 %323
      %v326 = vsub.f32 %v195, %v324
      %s327 = scalar_lea.vmem %s2, 8
      %v328 = vld [vmem:[%s327] sm:$0xff]
      %s329 = scalar_lea.vmem %s3, 16
      %v330 = vld [vmem:[%s329] sm:$0xff]
      %331 = vst.msk [vmem:[#allocation3] sm:$0xff] %vm154, 0.0
      %332 = vst.msk [vmem:[#allocation4] sm:$0xff] %vm154, 0.0
      %v333 = vld [vmem:[#allocation2] sm:$0xff]
      %334 = vset.pattern.permute.xlu0 1
      %335 = vperm.xlu0 %334, %v316
      %v336 = vpop.permute.xlu0 %335
      %v338 = vmul.f32 %v333, %v336
      %340 = vset.pattern.permute.xlu0 2
      %341 = vperm.xlu0 %340, %v326
      %v342 = vpop.permute.xlu0 %341
      %v344 = vadd.f32 %v338, %v342
      %346 = vset.pattern.permute.xlu0 0
      %347 = vperm.xlu0 %346, %v330
      %v348 = vpop.permute.xlu0 %347
      %v351 = vsel %vm149, %v328, 0
      %353 = vmatprep.subr.mxu0 0.0
      %354 = vmatpush1.msra.mxu0 %v344
      %355 = vmatprep.subr.mxu0 0.0
      %356 = vmatpush1.msra.mxu0 0.0
      %357 = vmatprep.subr.mxu0 0.0
      %358 = vmatpush1.msra.mxu0 0.0
      %359 = vmatprep.subr.mxu0 0.0
      %360 = vmatpush1.msra.mxu0 0.0
      %361 = vmatprep.subr.mxu0 0.0
      %362 = vmatpush1.msra.mxu0 0.0
      %363 = vmatprep.subr.mxu0 0.0
      %364 = vmatpush1.msra.mxu0 0.0
      %365 = vmatprep.subr.mxu0 0.0
      %366 = vmatpush1.msra.mxu0 0.0
      %367 = vmatprep.subr.mxu0 0.0
      %368 = vmatpush1.msra.mxu0 0.0
      %369 = vmatprep.subr.mxu0 0.0
      %370 = vmatpush1.msra.mxu0 0.0
      %371 = vmatprep.subr.mxu0 0.0
      %372 = vmatpush1.msra.mxu0 0.0
      %373 = vmatprep.subr.mxu0 0.0
      %374 = vmatpush1.msra.mxu0 0.0
      %375 = vmatprep.subr.mxu0 0.0
      %376 = vmatpush1.msra.mxu0 0.0
      %377 = vmatprep.subr.mxu0 0.0
      %378 = vmatpush1.msra.mxu0 0.0
      %379 = vmatprep.subr.mxu0 0.0
      %380 = vmatpush1.msra.mxu0 0.0
      %381 = vmatprep.subr.mxu0 0.0
      %382 = vmatpush1.msra.mxu0 0.0
      %383 = vmatprep.subr.mxu0 0.0
      %384 = vmatpush1.msra.mxu0 0.0
      %385 = vmatprep.subr.mxu0 0.0
      %386 = vmatpush1.msra.mxu0 0.0
      %387 = vmatprep.subr.mxu0 0.0
      %388 = vmatpush1.msra.mxu0 0.0
      %389 = vmatprep.subr.mxu0 0.0
      %390 = vmatpush1.msra.mxu0 0.0
      %391 = vmatprep.subr.mxu0 0.0
      %392 = vmatpush1.msra.mxu0 0.0
      %393 = vmatprep.subr.mxu0 0.0
      %394 = vmatpush1.msra.mxu0 0.0
      %395 = vmatprep.subr.mxu0 0.0
      %396 = vmatpush1.msra.mxu0 0.0
      %397 = vmatprep.subr.mxu0 0.0
      %398 = vmatpush1.msra.mxu0 0.0
      %399 = vmatprep.subr.mxu0 0.0
      %400 = vmatpush1.msra.mxu0 0.0
      %401 = vmatprep.subr.mxu0 0.0
      %402 = vmatpush1.msra.mxu0 0.0
      %403 = vmatprep.subr.mxu0 0.0
      %404 = vmatpush1.msra.mxu0 0.0
      %405 = vmatprep.subr.mxu0 0.0
      %406 = vmatpush1.msra.mxu0 0.0
      %407 = vmatprep.subr.mxu0 0.0
      %408 = vmatpush1.msra.mxu0 0.0
      %409 = vmatprep.subr.mxu0 0.0
      %410 = vmatpush1.msra.mxu0 0.0
      %411 = vmatprep.subr.mxu0 0.0
      %412 = vmatpush1.msra.mxu0 0.0
      %413 = vmatprep.subr.mxu0 0.0
      %414 = vmatpush1.msra.mxu0 0.0
      %415 = vmatprep.subr.mxu0 0.0
      %416 = vmatpush1.msra.mxu0 0.0
      %417 = vmatprep.mubr.f32.mxu0 0.0
      %418 = vmatmul.mubr.f32.gmra.mrb[0].mxu0 %v351
      %v419 = vpop.f32.mrb[0].mxu0
      %v420 = vadd.f32 %v348, %v419
      %v421 = vpop.f32.mrb[0].mxu0
      %422 = vdwg.mxu0
      %v423 = vmax.f32 %v420, 0.0
      %424 = vst.msk [vmem:[#allocation2] sm:$0xff] %vm149, %v423
      %v425 = vld [vmem:[#allocation3] sm:$0xff]
      %v426 = vsel %vm149, %v423, 0.0
      %427 = vadd.xlane.f32.xlu0 %v426
      %v428 = vpop.xlane.xlu0 %427
      %v429 = vadd.f32 %v425, %v428
      %430 = vst.msk [vmem:[#allocation3] sm:$0xff] %vm154, %v429
      %v431 = vld [vmem:[#allocation4] sm:$0xff]
      %v432 = vmul.f32 %v423, %v423
      %v433 = vsel %vm149, %v432, 0.0
      %434 = vadd.xlane.f32.xlu0 %v433
      %v435 = vpop.xlane.xlu0 %434
      %v436 = vadd.f32 %v431, %v435
      %437 = vst.msk [vmem:[#allocation4] sm:$0xff] %vm154, %v436
      %v438 = vld [vmem:[#allocation3] sm:$0xff]
      %v439 = vld [vmem:[#allocation4] sm:$0xff]
      %v440 = vmul.f32 %v438, 0.125
      %v441 = vmul.f32 %v439, 0.125
      %v442 = vmul.f32 %v440, %v440
      %v443 = vsub.f32 %v441, %v442
      %v444 = vmax.f32 %v443, 0.0
      %v445 = vadd.f32 %v444, 1e-05
      %v446 = vrsqrt.pop %v445
      %448 = vrot.lane.b32.xlu0 %v446, 1
      %v449 = vpop.permute.xlu0 %448
      %v451 = vmul.f32 %v330, %v449
      %453 = vrot.lane.b32.xlu0 %v451, 127
      %v454 = vpop.permute.xlu0 %453
      %v456 = vmul.f32 %v440, %v454
      %458 = vrot.lane.b32.xlu0 %v456, 2
      %v459 = vpop.permute.xlu0 %458
      %v461 = vsub.f32 %v330, %v459
      %s462 = scalar_lea.vmem %s2, 16
      %v463 = vld [vmem:[%s462] sm:$0xff]
      %s464 = scalar_lea.vmem %s3, 24
      %v465 = vld [vmem:[%s464] sm:$0xff]
      %466 = vst.msk [vmem:[#allocation3] sm:$0xff] %vm154, 0.0
      %467 = vst.msk [vmem:[#allocation4] sm:$0xff] %vm154, 0.0
      %v468 = vld [vmem:[#allocation2] sm:$0xff]
      %469 = vset.pattern.permute.xlu0 1
      %470 = vperm.xlu0 %469, %v451
      %v471 = vpop.permute.xlu0 %470
      %v473 = vmul.f32 %v468, %v471
      %475 = vset.pattern.permute.xlu0 2
      %476 = vperm.xlu0 %475, %v461
      %v477 = vpop.permute.xlu0 %476
      %v479 = vadd.f32 %v473, %v477
      %481 = vset.pattern.permute.xlu0 0
      %482 = vperm.xlu0 %481, %v465
      %v483 = vpop.permute.xlu0 %482
      %v486 = vsel %vm149, %v463, 0
      %488 = vmatprep.subr.mxu0 0.0
      %489 = vmatpush1.msra.mxu0 %v479
      %490 = vmatprep.subr.mxu0 0.0
      %491 = vmatpush1.msra.mxu0 0.0
      %492 = vmatprep.subr.mxu0 0.0
      %493 = vmatpush1.msra.mxu0 0.0
      %494 = vmatprep.subr.mxu0 0.0
      %495 = vmatpush1.msra.mxu0 0.0
      %496 = vmatprep.subr.mxu0 0.0
      %497 = vmatpush1.msra.mxu0 0.0
      %498 = vmatprep.subr.mxu0 0.0
      %499 = vmatpush1.msra.mxu0 0.0
      %500 = vmatprep.subr.mxu0 0.0
      %501 = vmatpush1.msra.mxu0 0.0
      %502 = vmatprep.subr.mxu0 0.0
      %503 = vmatpush1.msra.mxu0 0.0
      %504 = vmatprep.subr.mxu0 0.0
      %505 = vmatpush1.msra.mxu0 0.0
      %506 = vmatprep.subr.mxu0 0.0
      %507 = vmatpush1.msra.mxu0 0.0
      %508 = vmatprep.subr.mxu0 0.0
      %509 = vmatpush1.msra.mxu0 0.0
      %510 = vmatprep.subr.mxu0 0.0
      %511 = vmatpush1.msra.mxu0 0.0
      %512 = vmatprep.subr.mxu0 0.0
      %513 = vmatpush1.msra.mxu0 0.0
      %514 = vmatprep.subr.mxu0 0.0
      %515 = vmatpush1.msra.mxu0 0.0
      %516 = vmatprep.subr.mxu0 0.0
      %517 = vmatpush1.msra.mxu0 0.0
      %518 = vmatprep.subr.mxu0 0.0
      %519 = vmatpush1.msra.mxu0 0.0
      %520 = vmatprep.subr.mxu0 0.0
      %521 = vmatpush1.msra.mxu0 0.0
      %522 = vmatprep.subr.mxu0 0.0
      %523 = vmatpush1.msra.mxu0 0.0
      %524 = vmatprep.subr.mxu0 0.0
      %525 = vmatpush1.msra.mxu0 0.0
      %526 = vmatprep.subr.mxu0 0.0
      %527 = vmatpush1.msra.mxu0 0.0
      %528 = vmatprep.subr.mxu0 0.0
      %529 = vmatpush1.msra.mxu0 0.0
      %530 = vmatprep.subr.mxu0 0.0
      %531 = vmatpush1.msra.mxu0 0.0
      %532 = vmatprep.subr.mxu0 0.0
      %533 = vmatpush1.msra.mxu0 0.0
      %534 = vmatprep.subr.mxu0 0.0
      %535 = vmatpush1.msra.mxu0 0.0
      %536 = vmatprep.subr.mxu0 0.0
      %537 = vmatpush1.msra.mxu0 0.0
      %538 = vmatprep.subr.mxu0 0.0
      %539 = vmatpush1.msra.mxu0 0.0
      %540 = vmatprep.subr.mxu0 0.0
      %541 = vmatpush1.msra.mxu0 0.0
      %542 = vmatprep.subr.mxu0 0.0
      %543 = vmatpush1.msra.mxu0 0.0
      %544 = vmatprep.subr.mxu0 0.0
      %545 = vmatpush1.msra.mxu0 0.0
      %546 = vmatprep.subr.mxu0 0.0
      %547 = vmatpush1.msra.mxu0 0.0
      %548 = vmatprep.subr.mxu0 0.0
      %549 = vmatpush1.msra.mxu0 0.0
      %550 = vmatprep.subr.mxu0 0.0
      %551 = vmatpush1.msra.mxu0 0.0
      %552 = vmatprep.mubr.f32.mxu0 0.0
      %553 = vmatmul.mubr.f32.gmra.mrb[0].mxu0 %v486
      %v554 = vpop.f32.mrb[0].mxu0
      %v555 = vadd.f32 %v483, %v554
      %v556 = vpop.f32.mrb[0].mxu0
      %557 = vdwg.mxu0
      %v558 = vmax.f32 %v555, 0.0
      %559 = vst.msk [vmem:[#allocation2] sm:$0xff] %vm149, %v558
      %v560 = vld [vmem:[#allocation3] sm:$0xff]
      %v561 = vsel %vm149, %v558, 0.0
      %562 = vadd.xlane.f32.xlu0 %v561
      %v563 = vpop.xlane.xlu0 %562
      %v564 = vadd.f32 %v560, %v563
      %565 = vst.msk [vmem:[#allocation3] sm:$0xff] %vm154, %v564
      %v566 = vld [vmem:[#allocation4] sm:$0xff]
      %v567 = vmul.f32 %v558, %v558
      %v568 = vsel %vm149, %v567, 0.0
      %569 = vadd.xlane.f32.xlu0 %v568
      %v570 = vpop.xlane.xlu0 %569
      %v571 = vadd.f32 %v566, %v570
      %572 = vst.msk [vmem:[#allocation4] sm:$0xff] %vm154, %v571
      %v573 = vld [vmem:[#allocation3] sm:$0xff]
      %v574 = vld [vmem:[#allocation4] sm:$0xff]
      %v575 = vmul.f32 %v573, 0.125
      %v576 = vmul.f32 %v574, 0.125
      %v577 = vmul.f32 %v575, %v575
      %v578 = vsub.f32 %v576, %v577
      %v579 = vmax.f32 %v578, 0.0
      %v580 = vadd.f32 %v579, 1e-05
      %v581 = vrsqrt.pop %v580
      %583 = vrot.lane.b32.xlu0 %v581, 1
      %v584 = vpop.permute.xlu0 %583
      %v586 = vmul.f32 %v465, %v584
      %588 = vrot.lane.b32.xlu0 %v586, 127
      %v589 = vpop.permute.xlu0 %588
      %v591 = vmul.f32 %v575, %v589
      %593 = vrot.lane.b32.xlu0 %v591, 2
      %v594 = vpop.permute.xlu0 %593
      %v596 = vsub.f32 %v465, %v594
      %v597 = vld [vmem:[%s4] sm:$0xff]
      %v598 = vld [vmem:[%s5] sm:$0x1]
      %v599 = vld [vmem:[#allocation2] sm:$0xff]
      %600 = vset.pattern.permute.xlu0 1
      %601 = vperm.xlu0 %600, %v586
      %v602 = vpop.permute.xlu0 %601
      %v604 = vmul.f32 %v599, %v602
      %606 = vset.pattern.permute.xlu0 2
      %607 = vperm.xlu0 %606, %v596
      %v608 = vpop.permute.xlu0 %607
      %v610 = vadd.f32 %v604, %v608
      %611 = vxpose.xlu0.b32.start [1/16] %v610, 128
      %612 = vxpose.xlu0.b32.cont [2/16] 0.0, 128
      %613 = vxpose.xlu0.b32.cont [3/16] 0.0, 128
      %614 = vxpose.xlu0.b32.cont [4/16] 0.0, 128
      %615 = vxpose.xlu0.b32.cont [5/16] 0.0, 128
      %616 = vxpose.xlu0.b32.cont [6/16] 0.0, 128
      %617 = vxpose.xlu0.b32.cont [7/16] 0.0, 128
      %618 = vxpose.xlu0.b32.cont [8/16] 0.0, 128
      %619 = vxpose.xlu0.b32.cont [9/16] 0.0, 128
      %620 = vxpose.xlu0.b32.cont [10/16] 0.0, 128
      %621 = vxpose.xlu0.b32.cont [11/16] 0.0, 128
      %622 = vxpose.xlu0.b32.cont [12/16] 0.0, 128
      %623 = vxpose.xlu0.b32.cont [13/16] 0.0, 128
      %624 = vxpose.xlu0.b32.cont [14/16] 0.0, 128
      %625 = vxpose.xlu0.b32.cont [15/16] 0.0, 128
      %626 = vxpose.xlu0.b32.end [16/16] 0.0, 128
      %v627 = vpop.trf.xlu0
      %v628 = vpop.trf.xlu0
      %v629 = vpop.trf.xlu0
      %v630 = vpop.trf.xlu0
      %v631 = vpop.trf.xlu0
      %v632 = vpop.trf.xlu0
      %v633 = vpop.trf.xlu0
      %v634 = vpop.trf.xlu0
      %v635 = vpop.trf.xlu0
      %v636 = vpop.trf.xlu0
      %v637 = vpop.trf.xlu0
      %v638 = vpop.trf.xlu0
      %v639 = vpop.trf.xlu0
      %v640 = vpop.trf.xlu0
      %v641 = vpop.trf.xlu0
      %v642 = vpop.trf.xlu0
      %v644 = vlaneseq
      %v645 = vshrl.u32 %v644, 7
      %v646 = vsub.s32 0, %v645
      %v647 = vrot.slane %v598, %v646
      %v650 = vsel %vm149, %v627, 0
      %652 = vmatprep.subr.mxu0 0.0
      %653 = vmatpush1.msra.mxu0 %v597
      %654 = vmatprep.subr.mxu0 0.0
      %655 = vmatpush1.msra.mxu0 0.0
      %656 = vmatprep.subr.mxu0 0.0
      %657 = vmatpush1.msra.mxu0 0.0
      %658 = vmatprep.subr.mxu0 0.0
      %659 = vmatpush1.msra.mxu0 0.0
      %660 = vmatprep.subr.mxu0 0.0
      %661 = vmatpush1.msra.mxu0 0.0
      %662 = vmatprep.subr.mxu0 0.0
      %663 = vmatpush1.msra.mxu0 0.0
      %664 = vmatprep.subr.mxu0 0.0
      %665 = vmatpush1.msra.mxu0 0.0
      %666 = vmatprep.subr.mxu0 0.0
      %667 = vmatpush1.msra.mxu0 0.0
      %668 = vmatprep.subr.mxu0 0.0
      %669 = vmatpush1.msra.mxu0 0.0
      %670 = vmatprep.subr.mxu0 0.0
      %671 = vmatpush1.msra.mxu0 0.0
      %672 = vmatprep.subr.mxu0 0.0
      %673 = vmatpush1.msra.mxu0 0.0
      %674 = vmatprep.subr.mxu0 0.0
      %675 = vmatpush1.msra.mxu0 0.0
      %676 = vmatprep.subr.mxu0 0.0
      %677 = vmatpush1.msra.mxu0 0.0
      %678 = vmatprep.subr.mxu0 0.0
      %679 = vmatpush1.msra.mxu0 0.0
      %680 = vmatprep.subr.mxu0 0.0
      %681 = vmatpush1.msra.mxu0 0.0
      %682 = vmatprep.subr.mxu0 0.0
      %683 = vmatpush1.msra.mxu0 0.0
      %684 = vmatprep.subr.mxu0 0.0
      %685 = vmatpush1.msra.mxu0 0.0
      %686 = vmatprep.subr.mxu0 0.0
      %687 = vmatpush1.msra.mxu0 0.0
      %688 = vmatprep.subr.mxu0 0.0
      %689 = vmatpush1.msra.mxu0 0.0
      %690 = vmatprep.subr.mxu0 0.0
      %691 = vmatpush1.msra.mxu0 0.0
      %692 = vmatprep.subr.mxu0 0.0
      %693 = vmatpush1.msra.mxu0 0.0
      %694 = vmatprep.subr.mxu0 0.0
      %695 = vmatpush1.msra.mxu0 0.0
      %696 = vmatprep.subr.mxu0 0.0
      %697 = vmatpush1.msra.mxu0 0.0
      %698 = vmatprep.subr.mxu0 0.0
      %699 = vmatpush1.msra.mxu0 0.0
      %700 = vmatprep.subr.mxu0 0.0
      %701 = vmatpush1.msra.mxu0 0.0
      %702 = vmatprep.subr.mxu0 0.0
      %703 = vmatpush1.msra.mxu0 0.0
      %704 = vmatprep.subr.mxu0 0.0
      %705 = vmatpush1.msra.mxu0 0.0
      %706 = vmatprep.subr.mxu0 0.0
      %707 = vmatpush1.msra.mxu0 0.0
      %708 = vmatprep.subr.mxu0 0.0
      %709 = vmatpush1.msra.mxu0 0.0
      %710 = vmatprep.subr.mxu0 0.0
      %711 = vmatpush1.msra.mxu0 0.0
      %712 = vmatprep.subr.mxu0 0.0
      %713 = vmatpush1.msra.mxu0 0.0
      %714 = vmatprep.subr.mxu0 0.0
      %715 = vmatpush1.msra.mxu0 0.0
      %716 = vmatprep.mubr.f32.mxu0 0.0
      %717 = vmatmul.mubr.f32.gmra.mrb[0].mxu0 %v650
      %v718 = vpop.f32.mrb[0].mxu0
      %v719 = vadd.f32 %v647, %v718
      %v720 = vpop.f32.mrb[0].mxu0
      %721 = vdwg.mxu0
      %vm722 = vcmask 80896
      %723 = vst.msk [vmem:[#allocation5] sm:$0xff] %vm722, %v719
    $region33: #{tpu_custom_call.1} parent=1 // pred_fallthru
      _
    // Predicated region
    $region34: #{tpu_custom_call.1} parent=1 // pred_check
      _
    $region35: #{tpu_custom_call.1} parent=1 // pred_check_branch
      %725 = sbr.rel (0) target = $region37
    $region36: #{tpu_custom_call.1} parent=1 // pred_region
      %s727 = ssub.s32 128, 128
      %728 = vsyncadd [#allocation6], %s727
      %s730 = sshll.u32 [#allocation5], 4
      %s731 = int_to_ptr.vmem [resolvable:$true] %s730
      %733 = dma.vmem_to_hbm [thread:$0]  %s731, 128, %s6, [#allocation6]
    $region37: #{tpu_custom_call.1} parent=1 // pred_fallthru
      _
    // Predicated region
    $region38: #{tpu_custom_call.1} parent=1 // pred_check
      _
    $region39: #{tpu_custom_call.1} parent=1 // pred_check_branch
      %735 = sbr.rel (0) target = $region41
    $region40: #{tpu_custom_call.1} parent=1 // pred_region
      %736 = dma.done [#allocation6], 128
    $region41: #{tpu_custom_call.1} parent=1 // pred_fallthru
      _
    %737 = vsyncpa [#allocation6], 1

</llo_original>
